<compile_context>
chip_gen: v7x
topology: tpu7x:2x2x1
jax: 0.10.0
libtpu: 0.0.40
codegen_flags: <defaults>
</compile_context>

<pallas_src>
import math

import jax
import jax.numpy as jnp
from jax.experimental import pallas as pl
from jax.experimental.pallas import tpu as pltpu


_NEG_HALF_LOG_2PI = -0.5 * math.log(2.0 * math.pi)

_LANES = 128
_SUBLANES = 8
_BLOCK_ROWS = 512                 # (512, 128) f32 block = 256 KiB; ~1 MiB double-buffered
_PALLAS_MIN_ELEMS = 64 * 1024     # below this, a fused XLA elementwise op is strictly faster


# ----------------------------------------------------------------------------
# Kernel: standard-normal log_prob (loc=0, scale=1 folded in as constants).
#   log_prob(x) = -0.5 * x^2 - 0.5 * log(2*pi)
# ----------------------------------------------------------------------------
def _std_normal_log_prob_kernel(x_ref, out_ref):
    x = x_ref[...].astype(jnp.float32)          # in-register cast; math stays f32 (v5e-safe)
    out_ref[...] = (-0.5 * x * x + _NEG_HALF_LOG_2PI).astype(out_ref.dtype)


def _std_normal_log_prob_pallas(x):
    """Elementwise standard-normal log_prob via a tiled, pipelined Pallas call.

    Flattens x to 1-D, pads only the tail to a multiple of 1024 elements, and
    views it as a lane-dense (M, 128) slab tiled by (<=512, 128) blocks.
    """
    orig_shape = x.shape
    dtype = x.dtype
    numel = x.size

    flat = x.reshape(-1)
    tile = _SUBLANES * _LANES                          # 1024
    pad = (-numel) % tile
    if pad:
        flat = jnp.pad(flat, (0, pad))                 # tail-only pad (< 1024 elems)
    m = flat.size // _LANES                            # multiple of 8 by construction
    x2 = flat.reshape(m, _LANES)                       # free reshape (contiguous)

    block_rows = min(_BLOCK_ROWS, m)                   # m is a multiple of 8
    grid = (pl.cdiv(m, block_rows),)

    itemsize = jnp.dtype(dtype).itemsize
    cost = pl.CostEstimate(
        flops=2 * numel,
        transcendentals=0,
        bytes_accessed=2 * numel * itemsize,           # read x + write out
    )

    out = pl.pallas_call(
        _std_normal_log_prob_kernel,
        out_shape=jax.ShapeDtypeStruct((m, _LANES), dtype),
        grid=grid,
        in_specs=[pl.BlockSpec((block_rows, _LANES), lambda i: (i, 0))],
        out_specs=pl.BlockSpec((block_rows, _LANES), lambda i: (i, 0)),
        compiler_params=pltpu.CompilerParams(dimension_semantics=("parallel",)),
        cost_estimate=cost,
    )(x2)

    out_flat = out.reshape(-1)
    if pad:
        out_flat = out_flat[:numel]
    return out_flat.reshape(orig_shape)


def _std_normal_log_prob(x, *, force_pallas=False):
    """log_prob under Normal(0, 1); Pallas for large inputs, fused XLA for tiny ones."""
    if not force_pallas and x.size < _PALLAS_MIN_ELEMS:
        xf = x.astype(jnp.float32)
        return (-0.5 * xf * xf + _NEG_HALF_LOG_2PI).astype(x.dtype)
    return _std_normal_log_prob_pallas(x)


# ----------------------------------------------------------------------------
# Minimal JAX-side stand-in for torch.distributions.Normal as produced by the
# Actor (loc=0, scale=1), with log_prob backed by the Pallas kernel.
# ----------------------------------------------------------------------------
class NormalDist:
    """Standard-normal distribution (loc=0, scale=1), as returned by Actor.

    NOTE: this class assumes loc=0 / scale=1 (as the Actor always produces);
    sample()/log_prob() fold those constants in and would be wrong for other
    parameter values.
    """

    def __init__(self, loc, scale):
        self.loc = loc
        self.scale = scale

    def sample(self, key):
        # loc=0, scale=1 -> plain standard normal draw.
        return jax.random.normal(key, self.loc.shape, dtype=self.loc.dtype)

    def log_prob(self, x, *, force_pallas=False):
        return _std_normal_log_prob(x, force_pallas=force_pallas)


class Actor:
    """JAX/Pallas equivalent of the PyTorch Actor module (no parameters)."""

    def __init__(self, action_space_dim: int):
        self.action_space_dim = action_space_dim

    def forward(self):
        # Constants: left to XLA (no pallas_call), per the performance review.
        loc = jnp.zeros((self.action_space_dim,), dtype=jnp.float32)
        scale = jnp.ones((self.action_space_dim,), dtype=jnp.float32)
        return NormalDist(loc, scale)


if __name__ == "__main__":
    key = jax.random.PRNGKey(0)
    action_space_dim = 8

    actor = Actor(action_space_dim)
    dist = actor.forward()

    loc = jax.block_until_ready(dist.loc)
    scale = jax.block_until_ready(dist.scale)
    assert loc.shape == (action_space_dim,) and scale.shape == (action_space_dim,)
    assert jnp.all(loc == 0.0) and jnp.all(scale == 1.0)

    # Tiny, Actor-sized call: takes the fused-XLA fast path (no Pallas launch).
    x = jax.random.normal(key, (action_space_dim,), dtype=jnp.float32)
    lp = jax.block_until_ready(dist.log_prob(x))
    lp_ref = -0.5 * x * x - 0.5 * jnp.log(2.0 * jnp.pi)
    assert lp.shape == x.shape and lp.dtype == x.dtype
    assert jnp.allclose(lp, lp_ref, atol=1e-5)

    # Exercise the Pallas kernel itself (forced) on a small batch of actions:
    # flatten -> tail-pad to 1024 -> (8, 128) lane-dense tile, 1 grid step.
    xb = jax.random.normal(
        jax.random.PRNGKey(1), (16, action_space_dim), dtype=jnp.float32
    )
    lpb = jax.block_until_ready(dist.log_prob(xb, force_pallas=True))
    lpb_ref = -0.5 * xb * xb - 0.5 * jnp.log(2.0 * jnp.pi)
    assert lpb.shape == xb.shape and lpb.dtype == xb.dtype
    assert jnp.allclose(lpb, lpb_ref, atol=1e-5)

    # Pallas path with a ragged tail and bf16 input (dtype-preserving output).
    xc = jax.random.normal(jax.random.PRNGKey(2), (37, 9), dtype=jnp.bfloat16)
    lpc = jax.block_until_ready(dist.log_prob(xc, force_pallas=True))
    xc_f32 = xc.astype(jnp.float32)
    lpc_ref = (-0.5 * xc_f32 * xc_f32 - 0.5 * jnp.log(2.0 * jnp.pi)).astype(jnp.bfloat16)
    assert lpc.shape == xc.shape and lpc.dtype == xc.dtype
    assert jnp.allclose(
        lpc.astype(jnp.float32), lpc_ref.astype(jnp.float32), atol=1e-2
    )

    print("KERNEL_OK")
</pallas_src>

<mosaic_0001>
module attributes {stable_mosaic.version = 11 : i64} {
  func.func @_std_normal_log_prob_kernel(%arg0: i32, %arg1: memref<8x128xf32, #tpu.memory_space<vmem>>, %arg2: memref<8x128xf32, #tpu.memory_space<vmem>>) attributes {dimension_semantics = [#tpu.dimension_semantics<parallel>], iteration_bounds = array<i64: 1>, scalar_prefetch = 0 : i64, scratch_operands = 0 : i64, tpu.core_type = #tpu.core_type<tc>, window_params = [{transform_indices = @transform_0, window_bounds = array<i64: 8, 128>}, {transform_indices = @transform_1, window_bounds = array<i64: 8, 128>}]} {
    %c0 = arith.constant 0 : index
    %c0_0 = arith.constant 0 : index
    %0 = vector.load %arg1[%c0, %c0_0] : memref<8x128xf32, #tpu.memory_space<vmem>>, vector<8x128xf32>
    %cst = arith.constant -5.000000e-01 : f32
    %1 = vector.broadcast %cst : f32 to vector<8x128xf32>
    %2 = arith.mulf %1, %0 : vector<8x128xf32>
    %3 = arith.mulf %2, %0 : vector<8x128xf32>
    %cst_1 = arith.constant -0.918938517 : f32
    %4 = vector.broadcast %cst_1 : f32 to vector<8x128xf32>
    %5 = arith.addf %3, %4 : vector<8x128xf32>
    %c0_2 = arith.constant 0 : index
    %c0_3 = arith.constant 0 : index
    %6 = vector.load %arg2[%c0_2, %c0_3] : memref<8x128xf32, #tpu.memory_space<vmem>>, vector<8x128xf32>
    tpu.vector_store %arg2[%c0_2, %c0_3], %5 {strides = array<i32>} : memref<8x128xf32, #tpu.memory_space<vmem>>, vector<8x128xf32>,
    return
  }
  func.func @transform_0(%arg0: i32) -> (i32, i32) {
    %c0_i32 = arith.constant 0 : i32
    %c0_i32_0 = arith.constant 0 : i32
    return %arg0, %c0_i32 : i32, i32
  }
  func.func @transform_1(%arg0: i32) -> (i32, i32) {
    %c0_i32 = arith.constant 0 : i32
    %c0_i32_0 = arith.constant 0 : i32
    return %arg0, %c0_i32 : i32, i32
  }
}

</mosaic_0001>

<llo_original>
// kernel: tpu_custom_call.1
$region0: #{tpu_custom_call.1}
  #allocation0 [shape = 'u32[]', space=smem, size = 0x4, offset = 0x4, fixed_abs, tag = 'smem constant byte address 0x4 - core index']
  #allocation1 [shape = 'u32[144,128]{1,0:T(1,128)}', space=vmem, size = 0x12000, scoped, tag = 'internal scratch']
  %s0 = inlined_call_operand.hbm [shape: f32[8,128], index: 0, kind: input, shape index: {}]
  %s1 = inlined_call_operand.hbm [shape: f32[8,128], index: 1, kind: output, shape index: {}]
  %s2 = sld [smem:[#allocation0]]
  $region18: #{tpu_custom_call.1} parent=0
    _
  %s4 = ssub.s32 1, %s2
  %s5 = scalar_select 0, %s4, %s2
  $region1: #{tpu_custom_call.1} parent=0
    #allocation2 [shape = 'u8[4096]{0}', space=vmem, size = 0x1000, scoped, tag = 'input window, operand 0, single buffered']
    #allocation3 [shape = 's32[1]{0}', space=sflag, size = 0x4, scoped, tag = 'scoped memory for tpu_custom_call.1']
    #allocation4 [shape = 's32[1]{0}', space=sflag, size = 0x4, scoped, tag = 'scoped memory for tpu_custom_call.1']
    #allocation5 [shape = 'u8[4096]{0}', space=vmem, size = 0x1000, scoped, tag = 'output window, operand 0, single buffered']
    %6 = vsyncpa [#allocation3], 0
    %7 = vsyncpa [#allocation4], 0
    // Predicated region
    $region2: #{tpu_custom_call.1} parent=1 // pred_check
      _
    $region3: #{tpu_custom_call.1} parent=1 // pred_check_branch
      %9 = sbr.rel (0) target = $region5
    $region4: #{tpu_custom_call.1} parent=1 // pred_region
      %s11 = ssub.s32 128, 128
      %12 = vsyncadd [#allocation3], %s11
      %s14 = sshll.u32 [#allocation2], 4
      %s15 = int_to_ptr.vmem [resolvable:$true] %s14
      %17 = dma.hbm_to_vmem [thread:$0]  %s0, 128, %s15, [#allocation3]
    $region5: #{tpu_custom_call.1} parent=1 // pred_fallthru
      _
    // Predicated region
    $region6: #{tpu_custom_call.1} parent=1 // pred_check
      _
    $region7: #{tpu_custom_call.1} parent=1 // pred_check_branch
      %19 = sbr.rel (0) target = $region9
    $region8: #{tpu_custom_call.1} parent=1 // pred_region
      %20 = dma.done [#allocation3], 128
    $region9: #{tpu_custom_call.1} parent=1 // pred_fallthru
      _
    %v21 = vld [vmem:[#allocation2] sm:$0xff]
    %v22 = vmul.f32 %v21, -0.5
    %v23 = vmul.f32 %v22, %v21
    %v24 = vadd.f32 %v23, -0.9189385
    %25 = vst [vmem:[#allocation5] sm:$0xff] %v24
    // Predicated region
    $region10: #{tpu_custom_call.1} parent=1 // pred_check
      _
    $region11: #{tpu_custom_call.1} parent=1 // pred_check_branch
      %27 = sbr.rel (0) target = $region13
    $region12: #{tpu_custom_call.1} parent=1 // pred_region
      %s29 = ssub.s32 128, 128
      %30 = vsyncadd [#allocation4], %s29
      %s32 = sshll.u32 [#allocation5], 4
      %s33 = int_to_ptr.vmem [resolvable:$true] %s32
      %35 = dma.vmem_to_hbm [thread:$0]  %s33, 128, %s1, [#allocation4]
    $region13: #{tpu_custom_call.1} parent=1 // pred_fallthru
      _
    // Predicated region
    $region14: #{tpu_custom_call.1} parent=1 // pred_check
      _
    $region15: #{tpu_custom_call.1} parent=1 // pred_check_branch
      %37 = sbr.rel (0) target = $region17
    $region16: #{tpu_custom_call.1} parent=1 // pred_region
      %38 = dma.done [#allocation4], 128
    $region17: #{tpu_custom_call.1} parent=1 // pred_fallthru
      _
    %39 = vsyncpa [#allocation3], 1
    %40 = vsyncpa [#allocation4], 1

</llo_original>
